<compile_context>
chip_gen: v7x
topology: tpu7x:2x2x1
jax: 0.10.0
libtpu: 0.0.40
codegen_flags: <defaults>
</compile_context>

<pallas_src>
import functools
import math

import jax
import jax.numpy as jnp
from jax.experimental import pallas as pl
from jax.experimental.pallas import tpu as pltpu


# ---------------------------------------------------------------------------
# Kernel: pure VPU add of a (TB, TC) x-tile and a (TB, TC) PE-tile.
# ---------------------------------------------------------------------------
def _add_pe_kernel(x_ref, pe_ref, o_ref):
    x = x_ref[...].astype(jnp.float32)
    pe = pe_ref[...].astype(jnp.float32)
    o_ref[...] = (x + pe).astype(o_ref.dtype)


# ---------------------------------------------------------------------------
# Sinusoidal table (S, D), built once per (S, D, n, dtype) and cached.
# ---------------------------------------------------------------------------
@functools.lru_cache(maxsize=None)
def _pe_table(seq_len: int, embed_dim: int, n: float, dtype_name: str):
    pos = jnp.arange(seq_len, dtype=jnp.float32)[:, None]                 # (S, 1)
    c = jnp.exp(
        jnp.arange(0, embed_dim, 2, dtype=jnp.float32) * (-(math.log(n) / embed_dim))
    )                                                                      # (ceil(D/2),)
    ang = pos * c                                                          # (S, ceil(D/2))
    # Interleave: even columns sin, odd columns cos ([:, :D] handles odd D).
    pe = jnp.stack([jnp.sin(ang), jnp.cos(ang)], axis=-1).reshape(seq_len, -1)
    return pe[:, :embed_dim].astype(dtype_name)


# ---------------------------------------------------------------------------
# Chip-aware sizing hints.
# ---------------------------------------------------------------------------
def _chip_hints():
    """(target bytes per x/out block, TensorCores per chip)."""
    kind = ""
    try:
        kind = jax.devices()[0].device_kind.lower()
    except Exception:  # detection failure -> conservative defaults
        pass
    is_v5 = "v5" in kind
    is_v7 = ("v7" in kind) or ("7x" in kind)
    target_bytes = (2 if is_v5 else 4) * 1024 * 1024
    return target_bytes, (2 if is_v7 else 1)


def _plan(B, S, D, x_itemsize):
    """Choose (TB, TC, phases, n_rep, n_col, pe_reps, pe_mode)."""
    R = B * S
    target_bytes, n_cores = _chip_hints()
    total_bytes = R * D * x_itemsize
    if n_cores >= 2:
        # Guarantee >= 2 blocks along a parallel axis whenever there is enough
        # work, so both v7x TensorCores are fed.
        target_bytes = min(target_bytes, max(256 * 1024, total_bytes // 2))
    target_elems = max(8 * 128, target_bytes // x_itemsize)

    # Column (lane) tile: multiple of 128 when possible, else full D
    # (full-dim block is always legal; TB below bounds the block size).
    if D % 128 == 0:
        tc = min(D, max(128, (target_elems // 8) // 128 * 128))
    else:
        tc = D
    n_col = pl.cdiv(D, tc)

    # Row (sublane) tile.
    row_target = max(8, target_elems // tc)
    hard_max_rows = max(8, ((6 * 1024 * 1024) // x_itemsize // tc) // 8 * 8)

    if R <= row_target or R <= 8:
        # Single row block covering everything (full-dim block is always legal).
        tb, phases, pe_reps, pe_mode = R, 1, B, "periodic"
    elif S % 8 == 0 and S > row_target:
        # Sub-period blocks: largest multiple-of-8 divisor of S <= row_target.
        tb, d = 8, 8
        while d <= row_target:
            if S % d == 0:
                tb = d
            d += 8
        phases, pe_reps, pe_mode = S // tb, 1, "periodic"
    else:
        # Whole-period blocks: TB = k*S with TB a multiple of 8.
        m = 8 // math.gcd(S, 8)
        k = max(m, (row_target // S) // m * m)
        tb = k * S
        if tb >= R:
            tb, phases, pe_reps, pe_mode = R, 1, B, "periodic"
        elif tb > hard_max_rows:
            # Pathological (huge S not divisible by 8): bounded blocks with the
            # PE table broadcast over the batch instead (correct, bounded VMEM).
            tb = max(8, min(hard_max_rows, (row_target // 8) * 8))
            phases, pe_reps, pe_mode = 1, B, "broadcast"
        else:
            phases, pe_reps, pe_mode = 1, k, "periodic"

    n_rep = pl.cdiv(R, tb * phases)
    return tb, tc, phases, n_rep, n_col, pe_reps, pe_mode


# ---------------------------------------------------------------------------
# Jitted Pallas wrapper: x (B, S, D) + pe (S, D) broadcast over batch.
# ---------------------------------------------------------------------------
@jax.jit
def _apply_pe(x, pe):
    B, S, D = x.shape
    R = B * S
    x_itemsize = jnp.dtype(x.dtype).itemsize
    pe_itemsize = jnp.dtype(pe.dtype).itemsize
    tb, tc, phases, n_rep, n_col, pe_reps, pe_mode = _plan(B, S, D, x_itemsize)

    x2 = x.reshape(R, D)
    pe_in = pe if pe_reps == 1 else jnp.tile(pe, (pe_reps, 1))

    # Grid = (col, phase, batch-rep); batch-rep is innermost so in "periodic"
    # mode the PE block index (p, c) is constant across it and stays resident.
    x_index = lambda c, p, r: (r * phases + p, c)
    if pe_mode == "broadcast":
        pe_index = lambda c, p, r: (r, c)
    else:
        pe_index = lambda c, p, r: (p, c)

    # Double-buffered x-in + out + pe blocks, plus headroom. Documents the
    # budget and lifts the v5e 16 MiB scoped-VMEM default when needed.
    x_blk = tb * tc * x_itemsize
    pe_blk = tb * tc * pe_itemsize
    vmem_limit = int(min(max(2 * (2 * x_blk + pe_blk) + 4 * 1024 * 1024,
                             16 * 1024 * 1024),
                         48 * 1024 * 1024))

    out2 = pl.pallas_call(
        _add_pe_kernel,
        out_shape=jax.ShapeDtypeStruct((R, D), x.dtype),
        grid_spec=pltpu.PrefetchScalarGridSpec(
            num_scalar_prefetch=0,
            grid=(n_col, phases, n_rep),
            in_specs=[
                pl.BlockSpec((tb, tc), x_index),    # x tile
                pl.BlockSpec((tb, tc), pe_index),   # PE tile
            ],
            out_specs=pl.BlockSpec((tb, tc), x_index),
        ),
        compiler_params=pltpu.CompilerParams(
            dimension_semantics=("parallel", "parallel", "parallel"),
            vmem_limit_bytes=vmem_limit,
        ),
    )(x2, pe_in)

    return out2.reshape(B, S, D)


def standard_position_embedding(x: jax.Array, n: float = 1000.0) -> jax.Array:
    """x: [B, S, D] (or [S, D]).  Returns x + sinusoidal position embedding.

    Dropout is intentionally a no-op: the reference forward discards self.drop(x).
    """
    squeeze_batch = x.ndim == 2
    if squeeze_batch:
        x = x[None]
    _, S, D = x.shape
    # Store PE in x.dtype for bf16 inputs (halves its DMA stream); f32 otherwise.
    pe_dtype = jnp.bfloat16 if x.dtype == jnp.bfloat16 else jnp.float32
    pe = _pe_table(int(S), int(D), float(n), jnp.dtype(pe_dtype).name)
    out = _apply_pe(x, pe)
    return out[0] if squeeze_batch else out


# ---------------------------------------------------------------------------
# Pure-JAX reference mirroring the PyTorch double loop.
# ---------------------------------------------------------------------------
def _reference(x: jax.Array, n: float = 1000.0) -> jax.Array:
    _, S, D = x.shape
    pos = jnp.arange(S, dtype=jnp.float32)[:, None]
    c = jnp.exp(jnp.arange(0, D, 2, dtype=jnp.float32) * -(math.log(n) / D))
    ang = pos * c
    pe = jnp.zeros((S, D), jnp.float32)
    pe = pe.at[:, 0::2].set(jnp.sin(ang))
    pe = pe.at[:, 1::2].set(jnp.cos(ang)[:, : D // 2])
    return x + pe[None]


if __name__ == "__main__":
    key = jax.random.PRNGKey(0)

    # Shape consistent with the module: batch=2, seq_len=8, embed_dim=32.
    B, S, D = 2, 8, 32
    x = jax.random.normal(key, (B, S, D), dtype=jnp.float32)
    out = jax.block_until_ready(standard_position_embedding(x, n=1000.0))
    assert out.shape == (B, S, D) and out.dtype == jnp.float32
    assert jnp.allclose(out, _reference(x, n=1000.0), atol=1e-5, rtol=1e-5)

    # Non-128-multiple D and odd seq length (full-dim block path).
    x2 = jax.random.normal(jax.random.PRNGKey(1), (3, 5, 20), dtype=jnp.float32)
    out2 = jax.block_until_ready(standard_position_embedding(x2, n=1000.0))
    assert jnp.allclose(out2, _reference(x2, n=1000.0), atol=1e-5, rtol=1e-5)

    # Lane-dense, potentially multi-block path (exercises the general tiling).
    x3 = jax.random.normal(jax.random.PRNGKey(2), (2, 256, 256), dtype=jnp.float32)
    out3 = jax.block_until_ready(standard_position_embedding(x3, n=1000.0))
    assert jnp.allclose(out3, _reference(x3, n=1000.0), atol=1e-5, rtol=1e-5)

    print("KERNEL_OK")
</pallas_src>

<mosaic_0001>
module attributes {stable_mosaic.version = 11 : i64} {
  func.func @_add_pe_kernel(%arg0: i32, %arg1: i32, %arg2: i32, %arg3: memref<16x32xf32, #tpu.memory_space<vmem>>, %arg4: memref<16x32xf32, #tpu.memory_space<vmem>>, %arg5: memref<16x32xf32, #tpu.memory_space<vmem>>) attributes {dimension_semantics = [#tpu.dimension_semantics<parallel>, #tpu.dimension_semantics<parallel>, #tpu.dimension_semantics<parallel>], iteration_bounds = array<i64: 1, 1, 1>, scalar_prefetch = 0 : i64, scratch_operands = 0 : i64, tpu.core_type = #tpu.core_type<tc>, window_params = [{transform_indices = @transform_0, window_bounds = array<i64: 16, 32>}, {transform_indices = @transform_1, window_bounds = array<i64: 16, 32>}, {transform_indices = @transform_2, window_bounds = array<i64: 16, 32>}]} {
    %c0 = arith.constant 0 : index
    %c0_0 = arith.constant 0 : index
    %0 = vector.load %arg3[%c0, %c0_0] : memref<16x32xf32, #tpu.memory_space<vmem>>, vector<16x32xf32>
    %c0_1 = arith.constant 0 : index
    %c0_2 = arith.constant 0 : index
    %1 = vector.load %arg4[%c0_1, %c0_2] : memref<16x32xf32, #tpu.memory_space<vmem>>, vector<16x32xf32>
    %2 = arith.addf %0, %1 : vector<16x32xf32>
    %c0_3 = arith.constant 0 : index
    %c0_4 = arith.constant 0 : index
    %3 = vector.load %arg5[%c0_3, %c0_4] : memref<16x32xf32, #tpu.memory_space<vmem>>, vector<16x32xf32>
    tpu.vector_store %arg5[%c0_3, %c0_4], %2 {strides = array<i32>} : memref<16x32xf32, #tpu.memory_space<vmem>>, vector<16x32xf32>,
    return
  }
  func.func @transform_0(%arg0: i32, %arg1: i32, %arg2: i32) -> (i32, i32) {
    %c1_i32 = arith.constant 1 : i32
    %0 = arith.muli %arg2, %c1_i32 : i32
    %1 = arith.addi %0, %arg1 : i32
    %c0_i32 = arith.constant 0 : i32
    return %1, %arg0 : i32, i32
  }
  func.func @transform_1(%arg0: i32, %arg1: i32, %arg2: i32) -> (i32, i32) {
    %c0_i32 = arith.constant 0 : i32
    return %arg1, %arg0 : i32, i32
  }
  func.func @transform_2(%arg0: i32, %arg1: i32, %arg2: i32) -> (i32, i32) {
    %c1_i32 = arith.constant 1 : i32
    %0 = arith.muli %arg2, %c1_i32 : i32
    %1 = arith.addi %0, %arg1 : i32
    %c0_i32 = arith.constant 0 : i32
    return %1, %arg0 : i32, i32
  }
}

</mosaic_0001>

<llo_original>
// kernel: _apply_pe.1
$region0: #{_apply_pe.1}
  #allocation0 [shape = 'u32[]', space=smem, size = 0x4, offset = 0x4, fixed_abs, tag = 'smem constant byte address 0x4 - core index']
  #allocation1 [shape = 'u32[144,128]{1,0:T(1,128)}', space=vmem, size = 0x12000, scoped, tag = 'internal scratch']
  %s0 = inlined_call_operand.vmem [shape: f32[16,32], index: 0, kind: input, shape index: {}]
  %s1 = inlined_call_operand.vmem [shape: f32[16,32], index: 1, kind: input, shape index: {}]
  %s2 = inlined_call_operand.hbm [shape: f32[16,32], index: 2, kind: output, shape index: {}]
  %s3 = sld [smem:[#allocation0]]
  $region18: #{_apply_pe.1} parent=0
    _
  %s5 = ssub.s32 1, %s3
  %s6 = scalar_select 0, %s5, %s3
  $region1: #{_apply_pe.1} parent=0
    #allocation2 [shape = 'u8[8192]{0}', space=vmem, size = 0x2000, scoped, tag = 'output window, operand 0, single buffered']
    #allocation3 [shape = 's32[1]{0}', space=sflag, size = 0x4, scoped, tag = 'scoped memory for _apply_pe.1']
    %7 = vsyncpa [#allocation3], 0
    // Predicated region
    $region2: #{_apply_pe.1} parent=1 // pred_check
      _
    $region3: #{_apply_pe.1} parent=1 // pred_check_branch
      %9 = sbr.rel (0) target = $region5
    $region4: #{_apply_pe.1} parent=1 // pred_region
      %s10 = sadd.s32 0, 0
      %s11 = smul.u32 2, %s10
      %p12 = scmp.lt.s32.totalorder %s11, 1
      %s13 = scalar_select %p12, %s11, 1
      %s14 = smul.addr %s13, 8
      %s15 = scalar_lea.vmem %s0, %s14
      %s16 = sadd.s32 0, 0
      %s17 = smul.u32 2, %s16
    $region5: #{_apply_pe.1} parent=1 // pred_fallthru
      _
    // Predicated region
    $region6: #{_apply_pe.1} parent=1 // pred_check
      _
    $region7: #{_apply_pe.1} parent=1 // pred_check_branch
      %19 = sbr.rel (0) target = $region9
    $region8: #{_apply_pe.1} parent=1 // pred_region
      _
    $region9: #{_apply_pe.1} parent=1 // pred_fallthru
      _
    %s20 = sadd.s32 0, 0
    %s21 = smul.u32 2, %s20
    %p22 = scmp.lt.s32.totalorder %s21, 1
    %s23 = scalar_select %p22, %s21, 1
    %s24 = smul.addr %s23, 8
    %s25 = scalar_lea.vmem %s0, %s24
    %s26 = sadd.s32 0, 0
    %s27 = smul.u32 2, %s26
    %p28 = scmp.lt.s32.totalorder %s27, 1
    %s29 = scalar_select %p28, %s27, 1
    %s30 = smul.addr %s29, 8
    %s31 = scalar_lea.vmem %s0, %s30
    %s32 = sadd.s32 0, 0
    %s33 = smul.u32 2, %s32
    %s34 = sadd.s32 0, 0
    %s35 = smul.u32 2, %s34
    %v36 = vld [vmem:[%s31] sm:$0xff]
    %v37 = vld [vmem:[%s31 + $0x8] sm:$0xff]
    %v38 = vld [vmem:[%s1] sm:$0xff]
    %v39 = vld [vmem:[%s1 + $0x8] sm:$0xff]
    %v40 = vadd.f32 %v36, %v38
    %v41 = vadd.f32 %v37, %v39
    %vm42 = vcmask 261120
    %43 = vst.msk [vmem:[#allocation2] sm:$0xff] %vm42, %v40
    %44 = vst.msk [vmem:[#allocation2 + $0x8] sm:$0xff] %vm42, %v41
    // Predicated region
    $region10: #{_apply_pe.1} parent=1 // pred_check
      _
    $region11: #{_apply_pe.1} parent=1 // pred_check_branch
      %46 = sbr.rel (0) target = $region13
    $region12: #{_apply_pe.1} parent=1 // pred_region
      %s47 = sadd.s32 0, 0
      %s48 = smul.u32 2, %s47
      %s50 = ssub.s32 256, 256
      %51 = vsyncadd [#allocation3], %s50
      %s52 = smul.addr %s48, 128
      %s53 = scalar_lea.hbm %s2, %s52
      %s54 = sshll.u32 [#allocation2], 4
      %s55 = int_to_ptr.vmem [resolvable:$true] %s54
      %60 = dma.vmem_to_hbm [thread:$0]  %s55, 256, %s53, [#allocation3], 128, 128, 8
    $region13: #{_apply_pe.1} parent=1 // pred_fallthru
      _
    // Predicated region
    $region14: #{_apply_pe.1} parent=1 // pred_check
      _
    $region15: #{_apply_pe.1} parent=1 // pred_check_branch
      %62 = sbr.rel (0) target = $region17
    $region16: #{_apply_pe.1} parent=1 // pred_region
      %63 = dma.done [#allocation3], 256
    $region17: #{_apply_pe.1} parent=1 // pred_fallthru
      _
    %64 = vsyncpa [#allocation3], 1

</llo_original>
